<compile_context>
chip_gen: v6e
topology: v6e:2x2x1
jax: 0.10.0
libtpu: 0.0.40
codegen_flags: <defaults>
</compile_context>

<pallas_src>
import jax
import jax.numpy as jnp
from jax import lax
from jax.experimental import pallas as pl
from jax.experimental.pallas import tpu as pltpu


def _seg_loss_kernel(x_ref, labels_ref, masks_ref, out_ref, carry_ref):
    """One (stage, T-tile) grid step.

    x_ref:      (1, B, C, TT) logits, native dtype (C on sublanes, T on lanes)
    labels_ref: (B, TT) int32
    masks_ref:  (B, TT) bfloat16
    out_ref:    (1, 2, B, 128) float32 per-stage accumulator:
                  plane 0 = raw CE partial sums, plane 1 = raw smoothing sums
    carry_ref:  (B, C, 1) float32 scratch: last frame's log-probs of prev tile
    """
    t_idx = pl.program_id(1)

    @pl.when(t_idx == 0)
    def _():
        out_ref[...] = jnp.zeros_like(out_ref)
        # Explicit init so the carry is never read as stale/NaN scratch.
        carry_ref[...] = jnp.zeros_like(carry_ref)

    p = x_ref[0].astype(jnp.float32)          # (B, C, TT), f32 in-vreg
    b, c, tt = p.shape
    labels = labels_ref[...]                  # (B, TT) int32
    masks = masks_ref[...].astype(jnp.float32)  # (B, TT)

    # ---- log_softmax over the class axis (sublanes) ----
    m = jnp.max(p, axis=1, keepdims=True)
    z = p - m
    lse = jnp.log(jnp.sum(jnp.exp(z), axis=1, keepdims=True))
    lp = z - lse                              # (B, C, TT)

    # ---- cross entropy: -log-prob at the label class; no f32 one-hot ----
    # ignore_index (-100) never matches a class in [0, C) -> contributes 0.
    cls_iota = lax.broadcasted_iota(jnp.int32, (b, c, tt), 1)
    match = labels[:, None, :] == cls_iota
    ce = -jnp.sum(jnp.where(match, lp, 0.0), axis=1)          # (B, TT)

    # ---- temporal smoothing: min((lp[t]-lp[t-1])^2, 16) * masks[t] ----
    # Bulk path uses a full-tile roll; only tile column 0 (which wraps to the
    # last column) is wrong and gets a tiny correction below.
    rolled = pltpu.roll(lp, shift=1, axis=2)  # rolled[..., t] = lp[..., t-1]
    d = lp - rolled
    sq = jnp.minimum(d * d, 16.0)             # d*d >= 0 already
    sm = jnp.sum(sq, axis=1) * masks          # (B, TT)

    # ---- lane-tile folding to (B, 128) slabs: pure vreg adds, no XLU tree ----
    def lane_fold(x):
        acc = x[:, 0:128]
        for j in range(1, tt // 128):
            acc = acc + x[:, j * 128:(j + 1) * 128]
        return acc

    ce_partial = lane_fold(ce)                # (B, 128)
    sm_partial = lane_fold(sm)                # (B, 128)

    # ---- fix tile column 0 of the smoothing term ----
    # correct prev frame: previous tile's last frame (carry), or the frame
    # itself on the first T tile (diff -> 0, matching the reference's [1:]).
    lp0 = lp[:, :, 0:1]                       # (B, C, 1)
    wrap0 = rolled[:, :, 0:1]                 # == lp[:, :, tt-1] (wrapped)
    prev0 = jnp.where(t_idx == 0, lp0, carry_ref[...])
    dw = lp0 - wrap0
    dr = lp0 - prev0
    corr = (jnp.sum(jnp.minimum(dr * dr, 16.0) - jnp.minimum(dw * dw, 16.0),
                    axis=1) * masks[:, 0:1])  # (B, 1)
    lane_iota = lax.broadcasted_iota(jnp.int32, (1, 128), 1)
    sm_partial = sm_partial + jnp.where(lane_iota == 0, corr, 0.0)

    # carry for the next T tile: this tile's last-frame log-probs.
    carry_ref[...] = wrap0

    out_ref[0, 0, :, :] = out_ref[0, 0, :, :] + ce_partial
    out_ref[0, 1, :, :] = out_ref[0, 1, :, :] + sm_partial


def _pick_t_tile(b, c, t_pad, in_itemsize, budget_bytes=20 * 1024 * 1024):
    """Largest 128-multiple tile whose live set fits a v7x-safe VMEM budget.

    Live set per tile ~ 5 f32 (B,C,tile) intermediates + double-buffered
    native-dtype input block.
    """
    for cand in (2048, 1024, 512, 256, 128):
        if t_pad % cand != 0:
            continue
        live = b * c * cand * (5 * 4 + 2 * in_itemsize)
        if live <= budget_bytes:
            return cand
    return 128


def actionclip_segmentation_loss(model_output, input_data, *, num_classes,
                                 loss_weight=1.0, smooth_weight=0.5,
                                 ignore_index=-100, eps=1e-10, t_tile=None):
    head_score = model_output["output"]                    # (N, B, C, T), native dtype
    labels = input_data["labels"].astype(jnp.int32)        # (B, T)
    masks = input_data["masks"]                            # (B, T)
    psn = input_data["precise_sliding_num"].astype(jnp.float32).reshape(-1)  # (B,)

    n_stages, b, c, t = head_score.shape
    assert c == num_classes

    # Global valid count (on the un-padded labels).
    num_valid = jnp.sum(labels != ignore_index).astype(jnp.float32)

    # Pad T to a multiple of 128 (lane width): finite zero logits, ignored
    # labels, zero masks -> padded frames contribute exactly 0 to both terms.
    t_pad = ((t + 127) // 128) * 128
    if t_pad != t:
        pad = t_pad - t
        head_score = jnp.pad(head_score, ((0, 0), (0, 0), (0, 0), (0, pad)))
        labels = jnp.pad(labels, ((0, 0), (0, pad)), constant_values=ignore_index)
        masks = jnp.pad(masks, ((0, 0), (0, pad)))
    masks_bf16 = masks.astype(jnp.bfloat16)

    if t_tile is None or t_pad % t_tile != 0 or t_tile % 128 != 0:
        t_tile = _pick_t_tile(b, c, t_pad, jnp.dtype(head_score.dtype).itemsize)
    n_t = t_pad // t_tile

    out = pl.pallas_call(
        _seg_loss_kernel,
        out_shape=jax.ShapeDtypeStruct((n_stages, 2, b, 128), jnp.float32),
        grid_spec=pltpu.PrefetchScalarGridSpec(
            num_scalar_prefetch=0,
            grid=(n_stages, n_t),
            in_specs=[
                pl.BlockSpec((1, b, c, t_tile), lambda s, k: (s, 0, 0, k)),
                pl.BlockSpec((b, t_tile), lambda s, k: (0, k)),
                pl.BlockSpec((b, t_tile), lambda s, k: (0, k)),
            ],
            out_specs=pl.BlockSpec((1, 2, b, 128), lambda s, k: (s, 0, 0, 0)),
            scratch_shapes=[pltpu.VMEM((b, c, 1), jnp.float32)],
        ),
        compiler_params=pltpu.CompilerParams(
            dimension_semantics=("parallel", "arbitrary"),
            vmem_limit_bytes=32 * 1024 * 1024,
        ),
    )(head_score, labels, masks_bf16)

    # Final tiny reduction + all normalisation on the (N, 2, B, 128) output.
    sums = jnp.sum(out, axis=-1)               # (N, 2, B)
    inv_psn = 1.0 / (psn + eps)                # (B,)
    ce_stage = jnp.sum(sums[:, 0, :] * inv_psn[None, :], axis=-1) / (num_valid + eps)
    sm_stage = (smooth_weight / float(b * max(t - 1, 1) * c)
                * jnp.sum(sums[:, 1, :] * inv_psn[None, :], axis=-1))
    loss = loss_weight * jnp.sum(ce_stage + sm_stage)
    return {"loss": loss}


def _reference_loss(model_output, input_data, *, num_classes, loss_weight=1.0,
                    smooth_weight=0.5, ignore_index=-100, eps=1e-10):
    """Pure-JAX reference mirroring the PyTorch forward (for sanity check)."""
    head_score = model_output["output"].astype(jnp.float32)
    labels = input_data["labels"].astype(jnp.int32)
    masks = input_data["masks"].astype(jnp.float32)
    psn = input_data["precise_sliding_num"].astype(jnp.float32)
    n_stages, b, c, t = head_score.shape

    loss = 0.0
    for s in range(n_stages):
        p = head_score[s]                                   # (B, C, T)
        lp = jax.nn.log_softmax(p, axis=1)                  # (B, C, T)
        onehot = jax.nn.one_hot(jnp.clip(labels, 0, c - 1), c, axis=1)
        ce = -jnp.sum(lp * onehot, axis=1)                  # (B, T)
        valid = (labels != ignore_index).astype(jnp.float32)
        ce = ce * valid
        num_valid = jnp.sum(valid)
        loss = loss + jnp.sum(jnp.sum(ce, axis=-1) / (psn + eps)) / (num_valid + eps)

        d = lp[:, :, 1:] - lp[:, :, :-1]
        sq = jnp.clip(d * d, 0.0, 16.0) * masks[:, None, 1:]
        per_b = jnp.mean(sq.reshape(b, -1), axis=-1)
        loss = loss + smooth_weight * jnp.mean(per_b / (psn + eps))
    return loss * loss_weight


if __name__ == "__main__":
    key = jax.random.PRNGKey(0)
    k1, k2, k3, k4 = jax.random.split(key, 4)

    # T = 200 exercises both the cross-tile carry (boundary at t=128) and the
    # wrapper-side padding to 256.
    n_stages, b, num_classes, t = 2, 2, 8, 200

    head_score = jax.random.normal(k1, (n_stages, b, num_classes, t), jnp.float32)
    labels = jax.random.randint(k2, (b, t), 0, num_classes, dtype=jnp.int32)
    ignore = jax.random.bernoulli(k3, 0.2, (b, t))
    labels = jnp.where(ignore, -100, labels)
    masks = (~ignore).astype(jnp.float32)
    precise_sliding_num = 1.0 + jax.random.uniform(k4, (b,), jnp.float32)

    model_output = {
        "image_feature": jnp.zeros((b, 32), jnp.float32),   # unused by the loss
        "text_feature": jnp.zeros((b, 32), jnp.float32),    # unused by the loss
        "output": head_score,
    }
    input_data = {
        "masks": masks,
        "labels": labels,
        "precise_sliding_num": precise_sliding_num,
    }

    out = actionclip_segmentation_loss(
        model_output, input_data, num_classes=num_classes,
        loss_weight=1.0, smooth_weight=0.5, t_tile=128)
    loss = jax.block_until_ready(out["loss"])

    ref = jax.block_until_ready(_reference_loss(
        model_output, input_data, num_classes=num_classes,
        loss_weight=1.0, smooth_weight=0.5))

    assert jnp.allclose(loss, ref, rtol=1e-4, atol=1e-5), (loss, ref)
    print("KERNEL_OK")
</pallas_src>

<mosaic_0001>
module attributes {stable_mosaic.version = 11 : i64} {
  func.func @_seg_loss_kernel(%arg0: i32, %arg1: i32, %arg2: memref<1x2x8x128xf32, #tpu.memory_space<vmem>>, %arg3: memref<2x128xi32, #tpu.memory_space<vmem>>, %arg4: memref<2x128xbf16, #tpu.memory_space<vmem>>, %arg5: memref<1x2x2x128xf32, #tpu.memory_space<vmem>>, %arg6: memref<2x8x1xf32, #tpu.memory_space<vmem>>) attributes {dimension_semantics = [#tpu.dimension_semantics<parallel>, #tpu.dimension_semantics<arbitrary>], iteration_bounds = array<i64: 2, 2>, scalar_prefetch = 0 : i64, scratch_operands = 1 : i64, tpu.core_type = #tpu.core_type<tc>, window_params = [{transform_indices = @transform_0, window_bounds = array<i64: 1, 2, 8, 128>}, {transform_indices = @transform_1, window_bounds = array<i64: 2, 128>}, {transform_indices = @transform_2, window_bounds = array<i64: 2, 128>}, {transform_indices = @transform_3, window_bounds = array<i64: 1, 2, 2, 128>}]} {
    %c0_i32 = arith.constant 0 : i32
    %0 = arith.cmpi eq, %arg1, %c0_i32 : i32
    %1 = arith.extui %0 : i1 to i32
    %c0_i32_0 = arith.constant 0 : i32
    %2 = arith.cmpi ne, %1, %c0_i32_0 : i32
    scf.if %2 {
      %cst_41 = arith.constant 0.000000e+00 : f32
      %74 = vector.broadcast %cst_41 : f32 to vector<1x2x2x128xf32>
      %c0_42 = arith.constant 0 : index
      %c0_43 = arith.constant 0 : index
      %c0_44 = arith.constant 0 : index
      %c0_45 = arith.constant 0 : index
      %75 = vector.load %arg5[%c0_42, %c0_43, %c0_44, %c0_45] : memref<1x2x2x128xf32, #tpu.memory_space<vmem>>, vector<1x2x2x128xf32>
      tpu.vector_store %arg5[%c0_42, %c0_43, %c0_44, %c0_45], %74 {strides = array<i32>} : memref<1x2x2x128xf32, #tpu.memory_space<vmem>>, vector<1x2x2x128xf32>,
      %cst_46 = arith.constant 0.000000e+00 : f32
      %76 = vector.broadcast %cst_46 : f32 to vector<2x8x1xf32>
      %c0_47 = arith.constant 0 : index
      %c0_48 = arith.constant 0 : index
      %c0_49 = arith.constant 0 : index
      %77 = vector.load %arg6[%c0_47, %c0_48, %c0_49] : memref<2x8x1xf32, #tpu.memory_space<vmem>>, vector<2x8x1xf32>
      tpu.vector_store %arg6[%c0_47, %c0_48, %c0_49], %76 {strides = array<i32>} : memref<2x8x1xf32, #tpu.memory_space<vmem>>, vector<2x8x1xf32>,
    } else {
    }
    %c0 = arith.constant 0 : index
    %c0_1 = arith.constant 0 : index
    %c0_2 = arith.constant 0 : index
    %c0_3 = arith.constant 0 : index
    %3 = vector.load %arg2[%c0, %c0_1, %c0_2, %c0_3] : memref<1x2x8x128xf32, #tpu.memory_space<vmem>>, vector<1x2x8x128xf32>
    %4 = vector.shape_cast %3 : vector<1x2x8x128xf32> to vector<2x8x128xf32>
    %c0_4 = arith.constant 0 : index
    %c0_5 = arith.constant 0 : index
    %5 = vector.load %arg3[%c0_4, %c0_5] : memref<2x128xi32, #tpu.memory_space<vmem>>, vector<2x128xi32>
    %c0_6 = arith.constant 0 : index
    %c0_7 = arith.constant 0 : index
    %6 = vector.load %arg4[%c0_6, %c0_7] : memref<2x128xbf16, #tpu.memory_space<vmem>>, vector<2x128xbf16>
    %7 = arith.extf %6 : vector<2x128xbf16> to vector<2x128xf32>
    %cst = arith.constant dense<0xFF800000> : vector<2x128xf32>
    %8 = vector.multi_reduction <maximumf>, %4, %cst [1] : vector<2x8x128xf32> to vector<2x128xf32>
    %9 = vector.shape_cast %8 : vector<2x128xf32> to vector<2x1x128xf32>
    %10 = vector.broadcast %9 : vector<2x1x128xf32> to vector<2x8x128xf32>
    %11 = arith.subf %4, %10 : vector<2x8x128xf32>
    %12 = math.exp %11 : vector<2x8x128xf32>
    %cst_8 = arith.constant dense<0.000000e+00> : vector<2x128xf32>
    %13 = vector.multi_reduction <add>, %12, %cst_8 [1] : vector<2x8x128xf32> to vector<2x128xf32>
    %14 = vector.shape_cast %13 : vector<2x128xf32> to vector<2x1x128xf32>
    %15 = math.log %14 : vector<2x1x128xf32>
    %16 = vector.broadcast %15 : vector<2x1x128xf32> to vector<2x8x128xf32>
    %17 = arith.subf %11, %16 : vector<2x8x128xf32>
    %18 = tpu.iota {dimensions = array<i32: 1>} : vector<2x8x128xi32>
    %19 = vector.shape_cast %5 : vector<2x128xi32> to vector<2x1x128xi32>
    %20 = vector.broadcast %19 : vector<2x1x128xi32> to vector<2x8x128xi32>
    %21 = arith.cmpi eq, %20, %18 : vector<2x8x128xi32>
    %cst_9 = arith.constant 0.000000e+00 : f32
    %22 = vector.broadcast %cst_9 : f32 to vector<2x8x128xf32>
    %23 = arith.select %21, %17, %22 : vector<2x8x128xi1>, vector<2x8x128xf32>
    %cst_10 = arith.constant dense<0.000000e+00> : vector<2x128xf32>
    %24 = vector.multi_reduction <add>, %23, %cst_10 [1] : vector<2x8x128xf32> to vector<2x128xf32>
    %cst_11 = arith.constant 0.000000e+00 : f32
    %25 = vector.broadcast %cst_11 : f32 to vector<2x128xf32>
    %26 = arith.subf %25, %24 : vector<2x128xf32>
    %c1_i32 = arith.constant 1 : i32
    %27 = tpu.dynamic_rotate %17 by %c1_i32 dim 2 : vector<2x8x128xf32>, i32 -> vector<2x8x128xf32>
    %28 = arith.subf %17, %27 : vector<2x8x128xf32>
    %29 = arith.mulf %28, %28 : vector<2x8x128xf32>
    %cst_12 = arith.constant 1.600000e+01 : f32
    %30 = vector.broadcast %cst_12 : f32 to vector<2x8x128xf32>
    %31 = arith.minimumf %29, %30 : vector<2x8x128xf32>
    %cst_13 = arith.constant dense<0.000000e+00> : vector<2x128xf32>
    %32 = vector.multi_reduction <add>, %31, %cst_13 [1] : vector<2x8x128xf32> to vector<2x128xf32>
    %33 = arith.mulf %32, %7 : vector<2x128xf32>
    %34 = vector.extract_strided_slice %17 {offsets = [0, 0, 0], sizes = [2, 8, 1], strides = [1, 1, 1]} : vector<2x8x128xf32> to vector<2x8x1xf32>
    %35 = vector.extract_strided_slice %27 {offsets = [0, 0, 0], sizes = [2, 8, 1], strides = [1, 1, 1]} : vector<2x8x128xf32> to vector<2x8x1xf32>
    %c0_i32_14 = arith.constant 0 : i32
    %36 = arith.cmpi eq, %arg1, %c0_i32_14 : i32
    %c0_15 = arith.constant 0 : index
    %c0_16 = arith.constant 0 : index
    %c0_17 = arith.constant 0 : index
    %37 = vector.load %arg6[%c0_15, %c0_16, %c0_17] : memref<2x8x1xf32, #tpu.memory_space<vmem>>, vector<2x8x1xf32>
    %38 = arith.select %36, %34, %37 : vector<2x8x1xf32>
    %39 = arith.subf %34, %35 : vector<2x8x1xf32>
    %40 = arith.subf %34, %38 : vector<2x8x1xf32>
    %41 = arith.mulf %40, %40 : vector<2x8x1xf32>
    %cst_18 = arith.constant 1.600000e+01 : f32
    %42 = vector.broadcast %cst_18 : f32 to vector<2x8x1xf32>
    %43 = arith.minimumf %41, %42 : vector<2x8x1xf32>
    %44 = arith.mulf %39, %39 : vector<2x8x1xf32>
    %cst_19 = arith.constant 1.600000e+01 : f32
    %45 = vector.broadcast %cst_19 : f32 to vector<2x8x1xf32>
    %46 = arith.minimumf %44, %45 : vector<2x8x1xf32>
    %47 = arith.subf %43, %46 : vector<2x8x1xf32>
    %cst_20 = arith.constant dense<0.000000e+00> : vector<2x1xf32>
    %48 = vector.multi_reduction <add>, %47, %cst_20 [1] : vector<2x8x1xf32> to vector<2x1xf32>
    %49 = vector.extract_strided_slice %7 {offsets = [0, 0], sizes = [2, 1], strides = [1, 1]} : vector<2x128xf32> to vector<2x1xf32>
    %50 = arith.mulf %48, %49 : vector<2x1xf32>
    %51 = tpu.iota {dimensions = array<i32: 1>} : vector<1x128xi32>
    %c0_i32_21 = arith.constant 0 : i32
    %52 = vector.broadcast %c0_i32_21 : i32 to vector<1x128xi32>
    %53 = arith.cmpi eq, %51, %52 : vector<1x128xi32>
    %cst_22 = arith.constant 0.000000e+00 : f32
    %54 = vector.shape_cast %53 : vector<1x128xi1> to vector<1x128xi1>
    %55 = vector.broadcast %54 : vector<1x128xi1> to vector<2x128xi1>
    %56 = vector.shape_cast %50 : vector<2x1xf32> to vector<2x1xf32>
    %57 = vector.broadcast %56 : vector<2x1xf32> to vector<2x128xf32>
    %58 = vector.broadcast %cst_22 : f32 to vector<2x128xf32>
    %59 = arith.select %55, %57, %58 : vector<2x128xi1>, vector<2x128xf32>
    %60 = arith.addf %33, %59 : vector<2x128xf32>
    %c0_23 = arith.constant 0 : index
    %c0_24 = arith.constant 0 : index
    %c0_25 = arith.constant 0 : index
    %61 = vector.load %arg6[%c0_23, %c0_24, %c0_25] : memref<2x8x1xf32, #tpu.memory_space<vmem>>, vector<2x8x1xf32>
    tpu.vector_store %arg6[%c0_23, %c0_24, %c0_25], %35 {strides = array<i32>} : memref<2x8x1xf32, #tpu.memory_space<vmem>>, vector<2x8x1xf32>,
    %c0_26 = arith.constant 0 : index
    %c0_27 = arith.constant 0 : index
    %c0_28 = arith.constant 0 : index
    %c0_29 = arith.constant 0 : index
    %62 = vector.load %arg5[%c0_26, %c0_27, %c0_28, %c0_29] : memref<1x2x2x128xf32, #tpu.memory_space<vmem>>, vector<1x1x2x128xf32>
    %63 = vector.shape_cast %62 : vector<1x1x2x128xf32> to vector<2x128xf32>
    %64 = arith.addf %63, %26 : vector<2x128xf32>
    %c0_30 = arith.constant 0 : index
    %c0_31 = arith.constant 0 : index
    %c0_32 = arith.constant 0 : index
    %c0_33 = arith.constant 0 : index
    %65 = vector.load %arg5[%c0_30, %c0_31, %c0_32, %c0_33] : memref<1x2x2x128xf32, #tpu.memory_space<vmem>>, vector<1x1x2x128xf32>
    %66 = vector.shape_cast %65 : vector<1x1x2x128xf32> to vector<2x128xf32>
    %67 = vector.shape_cast %64 : vector<2x128xf32> to vector<1x1x2x128xf32>
    tpu.vector_store %arg5[%c0_30, %c0_31, %c0_32, %c0_33], %67 {strides = array<i32>} : memref<1x2x2x128xf32, #tpu.memory_space<vmem>>, vector<1x1x2x128xf32>,
    %c0_34 = arith.constant 0 : index
    %c1 = arith.constant 1 : index
    %c0_35 = arith.constant 0 : index
    %c0_36 = arith.constant 0 : index
    %68 = vector.load %arg5[%c0_34, %c1, %c0_35, %c0_36] : memref<1x2x2x128xf32, #tpu.memory_space<vmem>>, vector<1x1x2x128xf32>
    %69 = vector.shape_cast %68 : vector<1x1x2x128xf32> to vector<2x128xf32>
    %70 = arith.addf %69, %60 : vector<2x128xf32>
    %c0_37 = arith.constant 0 : index
    %c1_38 = arith.constant 1 : index
    %c0_39 = arith.constant 0 : index
    %c0_40 = arith.constant 0 : index
    %71 = vector.load %arg5[%c0_37, %c1_38, %c0_39, %c0_40] : memref<1x2x2x128xf32, #tpu.memory_space<vmem>>, vector<1x1x2x128xf32>
    %72 = vector.shape_cast %71 : vector<1x1x2x128xf32> to vector<2x128xf32>
    %73 = vector.shape_cast %70 : vector<2x128xf32> to vector<1x1x2x128xf32>
    tpu.vector_store %arg5[%c0_37, %c1_38, %c0_39, %c0_40], %73 {strides = array<i32>} : memref<1x2x2x128xf32, #tpu.memory_space<vmem>>, vector<1x1x2x128xf32>,
    return
  }
  func.func @transform_0(%arg0: i32, %arg1: i32) -> (i32, i32, i32, i32) {
    %c0_i32 = arith.constant 0 : i32
    %c0_i32_0 = arith.constant 0 : i32
    %c0_i32_1 = arith.constant 0 : i32
    return %arg0, %c0_i32, %c0_i32_0, %arg1 : i32, i32, i32, i32
  }
  func.func @transform_1(%arg0: i32, %arg1: i32) -> (i32, i32) {
    %c0_i32 = arith.constant 0 : i32
    %c0_i32_0 = arith.constant 0 : i32
    return %c0_i32, %arg1 : i32, i32
  }
  func.func @transform_2(%arg0: i32, %arg1: i32) -> (i32, i32) {
    %c0_i32 = arith.constant 0 : i32
    %c0_i32_0 = arith.constant 0 : i32
    return %c0_i32, %arg1 : i32, i32
  }
  func.func @transform_3(%arg0: i32, %arg1: i32) -> (i32, i32, i32, i32) {
    %c0_i32 = arith.constant 0 : i32
    %c0_i32_0 = arith.constant 0 : i32
    %c0_i32_1 = arith.constant 0 : i32
    %c0_i32_2 = arith.constant 0 : i32
    return %arg0, %c0_i32, %c0_i32_0, %c0_i32_1 : i32, i32, i32, i32
  }
}

</mosaic_0001>

<llo_original>
// kernel: tpu_custom_call.1
$region0: #{tpu_custom_call.1}
  #allocation0 [shape = 'u32[]', space=smem, size = 0x4, offset = 0x4, fixed_abs, tag = 'smem constant byte address 0x4 - core index']
  #allocation1 [shape = 'u32[144,128]{1,0:T(1,128)}', space=vmem, size = 0x12000, scoped, tag = 'internal scratch']
  #allocation2 [shape = 'f32[2,8,1]{2,1,0:T(8,128)}', space=vmem, size = 0x2000, scoped, tag = 'scratch operand']
  %s0 = inlined_call_operand.hbm [shape: f32[2,2,8,256], index: 0, kind: input, shape index: {}]
  %s1 = inlined_call_operand.hbm [shape: s32[2,256], index: 1, kind: input, shape index: {}]
  %s2 = inlined_call_operand.vmem [shape: bf16[2,256], index: 2, kind: input, shape index: {}]
  %s3 = inlined_call_operand.hbm [shape: f32[2,2,2,128], index: 3, kind: output, shape index: {}]
  %s4 = sld [smem:[#allocation0]]
  $region57: #{tpu_custom_call.1} parent=0
    _
  %s6 = ssub.s32 1, %s4
  %s7 = scalar_select 0, %s6, %s4
  $region1: #{tpu_custom_call.1} parent=0
    #allocation3 [shape = 'u8[16384]{0}', space=vmem, size = 0x4000, scoped, tag = 'input window, operand 0']
    #allocation4 [shape = 's32[2]{0}', space=sflag, size = 0x8, scoped, tag = 'scoped memory for tpu_custom_call.1']
    #allocation5 [shape = 's32[2]{0}', space=sflag, size = 0x8, scoped, tag = 'scoped memory for tpu_custom_call.1']
    #allocation6 [shape = 'u8[2048]{0}', space=vmem, size = 0x800, scoped, tag = 'input window, operand 1']
    #allocation7 [shape = 's32[2]{0}', space=sflag, size = 0x8, scoped, tag = 'scoped memory for tpu_custom_call.1']
    #allocation8 [shape = 'u8[4096]{0}', space=vmem, size = 0x1000, scoped, tag = 'output window, operand 0']
    %8 = vsyncpa [#allocation4], 0
    %s9 = scalar_lea.sflag [#allocation4], 1
    %10 = vsyncpa %s9, 0
    %11 = vsyncpa [#allocation7], 0
    %s12 = scalar_lea.sflag [#allocation7], 1
    %13 = vsyncpa %s12, 0
    %14 = vsyncpa [#allocation5], 0
    %s15 = scalar_lea.sflag [#allocation5], 1
    %16 = vsyncpa %s15, 0
    loop: start=0, step=1, limit=6
    $region2: #{tpu_custom_call.1} parent=1 // loop_pre_header
      _
    $region3: #{tpu_custom_call.1} parent=1 // loop_header
      %s18 = sphi 0, %s22
      %p19 = scmp.ge.s32.totalorder %s18, 6
      %s25 = sphi 0, %s37
      %s26 = sphi 0, %s33
      %s27 = sphi 0, %s25
      %s28 = sphi 0, %s26
      %s29 = sphi 0, %s27
      %s30 = sphi 0, %s28
      %s42 = sphi 0, %s44
      %s45 = sphi 0, %s42
      %s46 = sphi 0, %s45
      %s62 = sphi 0, %s46
      %s68 = sphi 0, %s70
      %s71 = sphi 0, %s68
      %s72 = sphi 0, %s71
      %s88 = sphi 0, %s72
      %s94 = sphi 0, %s96
      %s97 = sphi 0, %s94
      %s98 = sphi 0, %s97
      %s114 = sphi 0, %s98
      %s120 = sphi 0, %s122
      %s123 = sphi 0, %s120
      %s124 = sphi 0, %s123
      %s140 = sphi 0, %s124
    $region4: #{tpu_custom_call.1} parent=1 // loop_header_branch
      %21 = sbr.rel (%p19) target = $region8
    $region5: #{tpu_custom_call.1} parent=1 // loop_body
      %s23 = ssub.s32 %s18, 1
      %s24 = ssub.s32 %s18, 2
      %s31 = sadd.s32 1, %s26
      %p32 = scmp.ge.s32.totalorder %s31, 2
      %s33 = scalar_select %p32, 0, %s31
      %s34 = sadd.s32 1, %s25
      %s35 = scalar_select %p32, %s34, %s25
      %p36 = scmp.ge.s32.totalorder %s35, 2
      %s37 = scalar_select %p36, 0, %s35
      %s38 = ssub.s32 %s25, %s37
      %s39 = ssub.s32 %s26, %s33
      %s40 = sor.u32 %s38, %s39
      %p41 = scmp.eq.s32.totalorder %s40, 0
      %s43 = sadd.s32 %s42, 1
      %s44 = scalar_select %p41, %s42, %s43
      %p47 = pneg %p41
      %p48 = scmp.eq.s32.totalorder %s18, 3
      %p49 = por %p47, %p48
      %p50 = scmp.ne.s32.totalorder %s42, %s45
      %p51 = scmp.eq.s32.totalorder %s18, 0
      %p52 = por %p50, %p51
      %p53 = scmp.ne.s32.totalorder %s42, %s45
      %p54 = scmp.eq.s32.totalorder %s23, 3
      %p55 = por %p53, %p54
      %p56 = scmp.ne.s32.totalorder %s45, %s46
      %p57 = scmp.eq.s32.totalorder %s23, 0
      %p58 = por %p56, %p57
      %p59 = scmp.ne.s32.totalorder %s45, %s46
      %p60 = scmp.eq.s32.totalorder %s24, 3
      %p61 = por %p59, %p60
      %p63 = scmp.ne.s32.totalorder %s46, %s62
      %p64 = scmp.eq.s32.totalorder %s24, 0
      %p65 = por %p63, %p64
      %s66 = ssub.s32 %s26, %s33
      %p67 = scmp.eq.s32.totalorder %s66, 0
      %s69 = sadd.s32 %s68, 1
      %s70 = scalar_select %p67, %s68, %s69
      %p73 = pneg %p67
      %p74 = scmp.eq.s32.totalorder %s18, 3
      %p75 = por %p73, %p74
      %p76 = scmp.ne.s32.totalorder %s68, %s71
      %p77 = scmp.eq.s32.totalorder %s18, 0
      %p78 = por %p76, %p77
      %p79 = scmp.ne.s32.totalorder %s68, %s71
      %p80 = scmp.eq.s32.totalorder %s23, 3
      %p81 = por %p79, %p80
      %p82 = scmp.ne.s32.totalorder %s71, %s72
      %p83 = scmp.eq.s32.totalorder %s23, 0
      %p84 = por %p82, %p83
      %p85 = scmp.ne.s32.totalorder %s71, %s72
      %p86 = scmp.eq.s32.totalorder %s24, 3
      %p87 = por %p85, %p86
      %p89 = scmp.ne.s32.totalorder %s72, %s88
      %p90 = scmp.eq.s32.totalorder %s24, 0
      %p91 = por %p89, %p90
      %s92 = ssub.s32 %s26, %s33
      %p93 = scmp.eq.s32.totalorder %s92, 0
      %s95 = sadd.s32 %s94, 1
      %s96 = scalar_select %p93, %s94, %s95
      %p99 = pneg %p93
      %p100 = scmp.eq.s32.totalorder %s18, 3
      %p101 = por %p99, %p100
      %p102 = scmp.ne.s32.totalorder %s94, %s97
      %p103 = scmp.eq.s32.totalorder %s18, 0
      %p104 = por %p102, %p103
      %p105 = scmp.ne.s32.totalorder %s94, %s97
      %p106 = scmp.eq.s32.totalorder %s23, 3
      %p107 = por %p105, %p106
      %p108 = scmp.ne.s32.totalorder %s97, %s98
      %p109 = scmp.eq.s32.totalorder %s23, 0
      %p110 = por %p108, %p109
      %p111 = scmp.ne.s32.totalorder %s97, %s98
      %p112 = scmp.eq.s32.totalorder %s24, 3
      %p113 = por %p111, %p112
      %p115 = scmp.ne.s32.totalorder %s98, %s114
      %p116 = scmp.eq.s32.totalorder %s24, 0
      %p117 = por %p115, %p116
      %s118 = ssub.s32 %s25, %s37
      %p119 = scmp.eq.s32.totalorder %s118, 0
      %s121 = sadd.s32 %s120, 1
      %s122 = scalar_select %p119, %s120, %s121
      %p125 = pneg %p119
      %p126 = scmp.eq.s32.totalorder %s18, 3
      %p127 = por %p125, %p126
      %p128 = scmp.ne.s32.totalorder %s120, %s123
      %p129 = scmp.eq.s32.totalorder %s18, 0
      %p130 = por %p128, %p129
      %p131 = scmp.ne.s32.totalorder %s120, %s123
      %p132 = scmp.eq.s32.totalorder %s23, 3
      %p133 = por %p131, %p132
      %p134 = scmp.ne.s32.totalorder %s123, %s124
      %p135 = scmp.eq.s32.totalorder %s23, 0
      %p136 = por %p134, %p135
      %p137 = scmp.ne.s32.totalorder %s123, %s124
      %p138 = scmp.eq.s32.totalorder %s24, 3
      %p139 = por %p137, %p138
      %p141 = scmp.ne.s32.totalorder %s124, %s140
      %p142 = scmp.eq.s32.totalorder %s24, 0
      %p143 = por %p141, %p142
      %p144 = scmp.le.s32.totalorder 1, %s18
      %p145 = scmp.lt.s32.totalorder %s18, 5
      %p146 = pnand %p144, %p145
      %p147 = pneg %p146
      // Predicated region
      $region9: #{tpu_custom_call.1} parent=5 // pred_check
        _
      $region10: #{tpu_custom_call.1} parent=5 // pred_check_branch
        %149 = sbr.rel (%p146) target = $region12
      $region11: #{tpu_custom_call.1} parent=5 // pred_region
        %s150 = ssub.s32 %s18, 1
      $region12: #{tpu_custom_call.1} parent=5 // pred_fallthru
        _
      %p151 = scmp.lt.s32.totalorder %s18, 4
      // Predicated region
      $region13: #{tpu_custom_call.1} parent=5 // pred_check
        %p152 = pneg %p151
      $region14: #{tpu_custom_call.1} parent=5 // pred_check_branch
        %154 = sbr.rel (%p152) target = $region16
      $region15: #{tpu_custom_call.1} parent=5 // pred_region
        // Predicated region
        $region17: #{tpu_custom_call.1} parent=15 // pred_check
          %p155 = pneg %p52
        $region18: #{tpu_custom_call.1} parent=15 // pred_check_branch
          %157 = sbr.rel (%p155) target = $region20
        $region19: #{tpu_custom_call.1} parent=15 // pred_region
          %s158 = sand.u32 %s42, 1
          %s159 = scalar_lea.sflag [#allocation4], %s158
          %s160 = sand.u32 %s42, 1
          %s161 = smul.addr %s160, 16
          %s162 = scalar_lea.vmem [#allocation3], %s161
          %s164 = ssub.s32 256, 256
          %165 = vsyncadd %s159, %s164
          %s166 = smul.addr %s25, 4
          %s167 = sadd.s32 %s26, %s166
          %s168 = smul.addr %s167, 128
          %s169 = scalar_lea.hbm %s0, %s168
          %s170 = sshll.u32 %s162, 4
          %s171 = int_to_ptr.vmem [resolvable:$true] %s170
          %176 = dma.hbm_to_vmem [thread:$0]  %s169, 256, %s171, %s159, 256, 128, 8
        $region20: #{tpu_custom_call.1} parent=15 // pred_fallthru
          _
        // Predicated region
        $region21: #{tpu_custom_call.1} parent=15 // pred_check
          %p177 = pneg %p78
        $region22: #{tpu_custom_call.1} parent=15 // pred_check_branch
          %179 = sbr.rel (%p177) target = $region24
        $region23: #{tpu_custom_call.1} parent=15 // pred_region
          %s180 = sand.u32 %s68, 1
          %s181 = scalar_lea.sflag [#allocation7], %s180
          %s182 = sand.u32 %s68, 1
          %s183 = smul.addr %s182, 2
          %s184 = scalar_lea.vmem [#allocation6], %s183
          %s186 = ssub.s32 32, 32
          %187 = vsyncadd %s181, %s186
          %s188 = smul.addr %s26, 32
          %s189 = scalar_lea.hbm %s1, %s188
          %s191 = sshll.u32 %s184, 4
          %s192 = int_to_ptr.vmem [resolvable:$true] %s191
          %194 = dma.hbm_to_vmem [thread:$0]  %s189, 32, %s192, %s181
        $region24: #{tpu_custom_call.1} parent=15 // pred_fallthru
          _
        // Predicated region
        $region25: #{tpu_custom_call.1} parent=15 // pred_check
          %p195 = pneg %p104
        $region26: #{tpu_custom_call.1} parent=15 // pred_check_branch
          %197 = sbr.rel (%p195) target = $region28
        $region27: #{tpu_custom_call.1} parent=15 // pred_region
          %p198 = scmp.lt.s32.totalorder %s26, 1
          %s199 = scalar_select %p198, %s26, 1
          %s200 = scalar_lea.vmem %s2, %s199
        $region28: #{tpu_custom_call.1} parent=15 // pred_fallthru
          _
      $region16: #{tpu_custom_call.1} parent=5 // pred_fallthru
        _
      %p201 = scmp.le.s32.totalorder 1, %s18
      %p202 = scmp.lt.s32.totalorder %s18, 5
      %p203 = pnand %p201, %p202
      %p204 = pneg %p203
      // Predicated region
      $region29: #{tpu_custom_call.1} parent=5 // pred_check
        _
      $region30: #{tpu_custom_call.1} parent=5 // pred_check_branch
        %206 = sbr.rel (%p203) target = $region32
      $region31: #{tpu_custom_call.1} parent=5 // pred_region
        %s207 = ssub.s32 %s18, 1
        %s208 = sand.u32 %s45, 1
        %s209 = scalar_lea.sflag [#allocation4], %s208
        %s210 = sand.u32 %s45, 1
        %s211 = smul.addr %s210, 16
        %s212 = scalar_lea.vmem [#allocation3], %s211
        // Predicated region
        $region33: #{tpu_custom_call.1} parent=31 // pred_check
          %p213 = pneg %p58
        $region34: #{tpu_custom_call.1} parent=31 // pred_check_branch
          %215 = sbr.rel (%p213) target = $region36
        $region35: #{tpu_custom_call.1} parent=31 // pred_region
          %216 = dma.done %s209, 256
        $region36: #{tpu_custom_call.1} parent=31 // pred_fallthru
          _
        %s217 = sand.u32 %s71, 1
        %s218 = scalar_lea.sflag [#allocation7], %s217
        %s219 = sand.u32 %s71, 1
        %s220 = smul.addr %s219, 2
        %s221 = scalar_lea.vmem [#allocation6], %s220
        // Predicated region
        $region37: #{tpu_custom_call.1} parent=31 // pred_check
          %p222 = pneg %p84
        $region38: #{tpu_custom_call.1} parent=31 // pred_check_branch
          %224 = sbr.rel (%p222) target = $region40
        $region39: #{tpu_custom_call.1} parent=31 // pred_region
          %225 = dma.done %s218, 32
        $region40: #{tpu_custom_call.1} parent=31 // pred_fallthru
          _
        %s226 = sand.u32 %s45, 1
        %s227 = scalar_lea.sflag [#allocation4], %s226
        %s228 = sand.u32 %s45, 1
        %s229 = smul.addr %s228, 16
        %s230 = scalar_lea.vmem [#allocation3], %s229
        %p231 = pneg %p58
        %p232 = pneg %p55
        %s233 = sand.u32 %s71, 1
        %s234 = scalar_lea.sflag [#allocation7], %s233
        %s235 = sand.u32 %s71, 1
        %s236 = smul.addr %s235, 2
        %s237 = scalar_lea.vmem [#allocation6], %s236
        %p238 = pneg %p84
        %p239 = pneg %p81
        %p240 = scmp.lt.s32.totalorder %s28, 1
        %s241 = scalar_select %p240, %s28, 1
        %s242 = scalar_lea.vmem %s2, %s241
        %p243 = pneg %p110
        %p244 = pneg %p107
        %p245 = pneg %p136
        %p246 = pneg %p133
        %s247 = sand.u32 %s123, 1
        %s248 = scalar_lea.sflag [#allocation5], %s247
        %s249 = sand.u32 %s123, 1
        %s250 = smul.addr %s249, 4
        %s251 = scalar_lea.vmem [#allocation8], %s250
        %p252 = scmp.lt.s32.totalorder %s28, 1
        %s253 = scalar_select %p252, %s28, 1
        %s254 = scalar_lea.vmem %s2, %s253
        %p255 = scmp.eq.s32.totalorder %s28, 0
        // Predicated region
        $region41: #{tpu_custom_call.1} parent=31 // pred_check
          %p256 = pneg %p255
        $region42: #{tpu_custom_call.1} parent=31 // pred_check_branch
          %258 = sbr.rel (%p256) target = $region44
        $region43: #{tpu_custom_call.1} parent=31 // pred_region
          %259 = vst [vmem:[%s251] sm:$0x3] 0.0
          %260 = vst [vmem:[%s251 + $0x2] sm:$0x3] 0.0
          %vm261 = vcmask 7168
          %262 = vst.msk [vmem:[#allocation2] sm:$0xff] %vm261, 0.0
          %263 = vst.msk [vmem:[#allocation2 + $0x8] sm:$0xff] %vm261, 0.0
        $region44: #{tpu_custom_call.1} parent=31 // pred_fallthru
          _
        %v264 = vld [vmem:[%s212] sm:$0xff]
        %v265 = vld [vmem:[%s212 + $0x8] sm:$0xff]
        %v266 = vld [vmem:[%s221] sm:$0x3]
        %v267 = vld [vmem:[%s254] sm:$0x1]
        %v268 = vunpack.c.l.bf16 %v267
        %v269 = vrot.slane %v264, 4
        %v270 = vmax.f32 %v264, %v269
        %v271 = vrot.slane %v270, 2
        %v272 = vmax.f32 %v270, %v271
        %v273 = vrot.slane %v272, 1
        %v274 = vmax.f32 %v272, %v273
        %v275 = vrot.slane %v265, 4
        %v276 = vmax.f32 %v265, %v275
        %v277 = vrot.slane %v276, 2
        %v278 = vmax.f32 %v276, %v277
        %v279 = vrot.slane %v278, 1
        %v280 = vmax.f32 %v278, %v279
        %v281 = vsub.f32 %v264, %v274
        %v282 = vsub.f32 %v265, %v280
        %v283 = vmul.f32 %v281, 1.442695
        %v284 = vpow.pop %v283
        %v285 = vmul.f32 %v282, 1.442695
        %v286 = vpow.pop %v285
        %v287 = vrot.slane %v284, 4
        %v288 = vadd.f32 %v284, %v287
        %v289 = vrot.slane %v288, 2
        %v290 = vadd.f32 %v288, %v289
        %v291 = vrot.slane %v290, 1
        %v292 = vadd.f32 %v290, %v291
        %v293 = vrot.slane %v286, 4
        %v294 = vadd.f32 %v286, %v293
        %v295 = vrot.slane %v294, 2
        %v296 = vadd.f32 %v294, %v295
        %v297 = vrot.slane %v296, 1
        %v298 = vadd.f32 %v296, %v297
        %v299 = vlog2.pop %v292
        %v300 = vmul.f32 %v299, 0.6931472
        %v301 = vlog2.pop %v298
        %v302 = vmul.f32 %v301, 0.6931472
        %v303 = vsub.f32 %v281, %v300
        %v304 = vsub.f32 %v282, %v302
        %v305 = vlaneseq
        %v306 = vshrl.u32 %v305, 7
        %v308 = vunpack.c.l.s4 1966171168
        %v309 = vunpack.c.0.s8 %v308
        %v310 = vlaneseq
        %v311 = vshrl.u32 %v310, 7
        %v312 = vsub.s32 %v309, %v311
        %v313 = vrot.slane %v266, %v312
        %v314 = vcombine.high %v313, %v313
        %v316 = vunpack.c.l.s4 1966171168
        %v317 = vunpack.c.0.s8 %v316
        %v318 = vlaneseq
        %v319 = vshrl.u32 %v318, 7
        %v320 = vsub.s32 %v317, %v319
        %v321 = vrot.slane %v313, %v320
        %v323 = vunpack.c.l.s4 1966171168
        %v324 = vunpack.c.0.s8 %v323
        %v325 = vlaneseq
        %v326 = vshrl.u32 %v325, 7
        %v327 = vsub.s32 %v324, %v326
        %v328 = vrot.slane %v314, %v327
        %v329 = vlaneseq
        %v330 = vshrl.u32 %v329, 7
        %v331 = vsub.s32 0, %v330
        %v332 = vrot.slane %v321, %v331
        %v333 = vlaneseq
        %v334 = vshrl.u32 %v333, 7
        %v335 = vsub.s32 0, %v334
        %v336 = vrot.slane %v328, %v335
        %vm337 = vcmp.eq.s32.totalorder %v332, %v306
        %vm338 = vcmp.eq.s32.totalorder %v336, %v306
        %v339 = vsel %vm337, %v303, 0.0
        %v340 = vsel %vm338, %v304, 0.0
        %v341 = vrot.slane %v339, 4
        %v342 = vadd.f32 %v339, %v341
        %v343 = vrot.slane %v342, 2
        %v344 = vadd.f32 %v342, %v343
        %v345 = vrot.slane %v344, 1
        %v346 = vadd.f32 %v344, %v345
        %v347 = vrot.slane %v340, 4
        %v348 = vadd.f32 %v340, %v347
        %v349 = vrot.slane %v348, 2
        %v350 = vadd.f32 %v348, %v349
        %v351 = vrot.slane %v350, 1
        %v352 = vadd.f32 %v350, %v351
        %v353 = vsub.f32 0.0, %v346
        %v354 = vsub.f32 0.0, %v352
        %355 = vrot.lane.b32.xlu0 %v303, 1
        %v356 = vpop.permute.xlu0 %355
        %357 = vrot.lane.b32.xlu0 %v304, 1
        %v358 = vpop.permute.xlu0 %357
        %v359 = vsub.f32 %v303, %v356
        %v360 = vsub.f32 %v304, %v358
        %v361 = vmul.f32 %v359, %v359
        %v362 = vmul.f32 %v360, %v360
        %v363 = vmin.f32 %v361, 16.0
        %v364 = vmin.f32 %v362, 16.0
        %v365 = vrot.slane %v363, 4
        %v366 = vadd.f32 %v363, %v365
        %v367 = vrot.slane %v366, 2
        %v368 = vadd.f32 %v366, %v367
        %v369 = vrot.slane %v368, 1
        %v370 = vadd.f32 %v368, %v369
        %v371 = vrot.slane %v364, 4
        %v372 = vadd.f32 %v364, %v371
        %v373 = vrot.slane %v372, 2
        %v374 = vadd.f32 %v372, %v373
        %v375 = vrot.slane %v374, 1
        %v376 = vadd.f32 %v374, %v375
        %v379 = vunpack.c.l.s4 1983009808
        %v380 = vunpack.c.0.s8 %v379
        %v381 = vlaneseq
        %v382 = vshrl.u32 %v381, 7
        %v383 = vsub.s32 %v380, %v382
        %v384 = vrot.slane %v268, %v383
        %v385 = vrot.slane %v384, 1
        %v388 = vmul.f32 %v370, %v384
        %v389 = vmul.f32 %v376, %v385
        %v390 = vld [vmem:[#allocation2] sm:$0xff]
        %v391 = vld [vmem:[#allocation2 + $0x8] sm:$0xff]
        %s392 = scalar_select %p255, 1, 0
        %v393 = vstv %s392
        %vm394 = vcmp.eq.s32.totalorder %v393, 1
        %v395 = vsel %vm394, %v303, %v390
        %v396 = vsel %vm394, %v304, %v391
        %v397 = vsub.f32 %v303, %v395
        %v398 = vsub.f32 %v304, %v396
        %v399 = vmul.f32 %v397, %v397
        %v400 = vmul.f32 %v398, %v398
        %v401 = vmin.f32 %v399, 16.0
        %v402 = vmin.f32 %v400, 16.0
        %v403 = vsub.f32 %v401, %v363
        %v404 = vsub.f32 %v402, %v364
        %vm405 = vcmask 7168
        %v406 = vsel %vm405, %v403, 0.0
        %v407 = vrot.slane %v406, 4
        %v408 = vadd.f32 %v406, %v407
        %v409 = vrot.slane %v408, 2
        %v410 = vadd.f32 %v408, %v409
        %v411 = vrot.slane %v410, 1
        %v412 = vadd.f32 %v410, %v411
        %v413 = vsel %vm405, %v404, 0.0
        %v414 = vrot.slane %v413, 4
        %v415 = vadd.f32 %v413, %v414
        %v416 = vrot.slane %v415, 2
        %v417 = vadd.f32 %v415, %v416
        %v418 = vrot.slane %v417, 1
        %v419 = vadd.f32 %v417, %v418
        %v420 = vmul.f32 %v412, %v384
        %v421 = vmul.f32 %v419, %v385
        %v422 = vlaneseq
        %v423 = vand.u32 %v422, 127
        %vm424 = vcmp.eq.s32.totalorder %v423, 0
        %v425 = vsel %vm424, 1, 0
        %vm426 = vcmp.eq.s32.totalorder %v425, 1
        %428 = vset.pattern.permute.xlu0 0
        %429 = vperm.xlu0 %428, %v420
        %v430 = vpop.permute.xlu0 %429
        %432 = vset.pattern.permute.xlu0 0
        %433 = vperm.xlu0 %432, %v421
        %v434 = vpop.permute.xlu0 %433
        %v435 = vrot.slane %v434, 7
        %vm436 = vcmask 1041409
        %v437 = vsel %vm436, %v435, %v430
        %v439 = vsel %vm426, %v437, 0.0
        %v441 = vrot.slane %v439, 1
        %v444 = vadd.f32 %v388, %v439
        %v445 = vadd.f32 %v389, %v441
        %446 = vst.msk [vmem:[#allocation2] sm:$0xff] %vm405, %v356
        %447 = vst.msk [vmem:[#allocation2 + $0x8] sm:$0xff] %vm405, %v358
        %v448 = vld [vmem:[%s251] sm:$0x3]
        %v451 = vsel %vm436, %v354, %v353
        %v453 = vadd.f32 %v448, %v451
        %454 = vst [vmem:[%s251] sm:$0x3] %v453
        %s455 = scalar_lea.vmem %s251, 2 [#allocation8]
        %v456 = vld [vmem:[%s455] sm:$0x3]
        %v459 = vrot.slane %v445, 7
        %v460 = vsel %vm436, %v459, %v444
        %v462 = vadd.f32 %v456, %v460
        %463 = vst [vmem:[%s455] sm:$0x3] %v462
        %s464 = sand.u32 %s123, 1
        %s465 = scalar_lea.sflag [#allocation5], %s464
        %s466 = sand.u32 %s123, 1
        %s467 = smul.addr %s466, 4
        %s468 = scalar_lea.vmem [#allocation8], %s467
        // Predicated region
        $region45: #{tpu_custom_call.1} parent=31 // pred_check
          %p469 = pneg %p133
        $region46: #{tpu_custom_call.1} parent=31 // pred_check_branch
          %471 = sbr.rel (%p469) target = $region48
        $region47: #{tpu_custom_call.1} parent=31 // pred_region
          %s473 = ssub.s32 64, 64
          %474 = vsyncadd %s465, %s473
          %s475 = smul.addr %s27, 2
          %s476 = smul.addr %s475, 32
          %s477 = scalar_lea.hbm %s3, %s476
          %s478 = sshll.u32 %s468, 4
          %s479 = int_to_ptr.vmem [resolvable:$true] %s478
          %484 = dma.vmem_to_hbm [thread:$0]  %s479, 64, %s477, %s465, 32, 32, 2
        $region48: #{tpu_custom_call.1} parent=31 // pred_fallthru
          _
      $region32: #{tpu_custom_call.1} parent=5 // pred_fallthru
        _
      %p485 = scmp.le.s32.totalorder 2, %s18
      // Predicated region
      $region49: #{tpu_custom_call.1} parent=5 // pred_check
        %p486 = pneg %p485
      $region50: #{tpu_custom_call.1} parent=5 // pred_check_branch
        %488 = sbr.rel (%p486) target = $region52
      $region51: #{tpu_custom_call.1} parent=5 // pred_region
        %s489 = ssub.s32 %s18, 2
        // Predicated region
        $region53: #{tpu_custom_call.1} parent=51 // pred_check
          %p490 = pneg %p139
        $region54: #{tpu_custom_call.1} parent=51 // pred_check_branch
          %492 = sbr.rel (%p490) target = $region56
        $region55: #{tpu_custom_call.1} parent=51 // pred_region
          %s493 = sand.u32 %s124, 1
          %s494 = scalar_lea.sflag [#allocation5], %s493
          %s495 = sand.u32 %s124, 1
          %s496 = smul.addr %s495, 4
          %s497 = scalar_lea.vmem [#allocation8], %s496
          %498 = dma.done %s494, 64
        $region56: #{tpu_custom_call.1} parent=51 // pred_fallthru
          _
      $region52: #{tpu_custom_call.1} parent=5 // pred_fallthru
        _
    $region6: #{tpu_custom_call.1} parent=1 // loop_footer
      %s22 = sadd.s32 1, %s18
    $region7: #{tpu_custom_call.1} parent=1 // loop_footer_branch
      %17 = sbr.rel target = $region3
    $region8: #{tpu_custom_call.1} parent=1 // loop_exit
      _
    %499 = vsyncpa [#allocation4], 1
    %s500 = scalar_lea.sflag [#allocation4], 1
    %501 = vsyncpa %s500, 1
    %502 = vsyncpa [#allocation7], 1
    %s503 = scalar_lea.sflag [#allocation7], 1
    %504 = vsyncpa %s503, 1
    %505 = vsyncpa [#allocation5], 1
    %s506 = scalar_lea.sflag [#allocation5], 1
    %507 = vsyncpa %s506, 1

</llo_original>
